<compile_context>
chip_gen: v7x
topology: tpu7x:2x2x1
jax: 0.10.0
libtpu: 0.0.40
codegen_flags: <defaults>
</compile_context>

<pallas_src>
import numpy as np
import jax
import jax.numpy as jnp
from jax.experimental import pallas as pl
from jax.experimental.pallas import tpu as pltpu


# ----------------------------- Pallas kernel --------------------------------

def _mac_kernel(x_ref, o_ref):
    # x_ref: (N, tc, tp)  spatial chunk of the flattened (N, C, H*W) feature map
    # o_ref: (N, tc)      running per-channel spatial max (accumulator over the
    #                     "arbitrary" spatial grid axis)
    @pl.when(pl.program_id(1) == 0)
    def _():
        o_ref[...] = jnp.full(o_ref.shape, -jnp.inf, dtype=o_ref.dtype)

    o_ref[...] = jnp.maximum(o_ref[...], jnp.max(x_ref[...], axis=-1))


# ----------------------------- kernel wrapper --------------------------------

def mac_pallas(x, *, spatial_tile=None, vmem_block_bytes=4 * 1024 * 1024):
    """Global spatial max pooling: (N, C, H, W) -> (N, C, 1, 1)."""
    N, C, H, W = x.shape
    P = H * W
    itemsize = jnp.dtype(x.dtype).itemsize

    # Channel tile: the "parallel" grid axis (sharded across TensorCores on
    # v7x).  Must be a multiple of 128 lanes unless it covers all of C.
    tc = 128 if (C % 128 == 0 and C > 128) else C

    # Spatial tile: the "arbitrary" reduction axis.  Bound the (double
    # buffered) input block so it stays comfortably inside VMEM.
    if spatial_tile is None:
        max_tp = (vmem_block_bytes // (N * tc * itemsize)) // 128 * 128
        max_tp = max(max_tp, 128)
    else:
        max_tp = max(128, (spatial_tile // 128) * 128)

    xf = x.reshape(N, C, P)
    if P <= max_tp:
        tp, Pp = P, P                        # single spatial tile (full extent)
    else:
        ntiles = pl.cdiv(P, max_tp)
        tp = pl.cdiv(pl.cdiv(P, ntiles), 128) * 128   # 128-lane aligned chunk
        Pp = ntiles * tp
        if Pp != P:                          # ragged tail -> -inf (max identity)
            xf = jnp.pad(xf, ((0, 0), (0, 0), (0, Pp - P)),
                         constant_values=-jnp.inf)

    grid = (C // tc, Pp // tp)
    out = pl.pallas_call(
        _mac_kernel,
        out_shape=jax.ShapeDtypeStruct((N, C), x.dtype),
        grid_spec=pltpu.PrefetchScalarGridSpec(
            num_scalar_prefetch=0,
            grid=grid,
            in_specs=[pl.BlockSpec((N, tc, tp), lambda c, p: (0, c, p))],
            out_specs=pl.BlockSpec((N, tc), lambda c, p: (0, c)),
        ),
        compiler_params=pltpu.CompilerParams(
            dimension_semantics=("parallel", "arbitrary")),
    )(xf)
    return out.reshape(N, C, 1, 1)


# --------------------------------- reference ---------------------------------

def mac_ref(x):
    # F.max_pool2d(x, (H, W)) == per-channel global spatial max
    return jnp.max(x, axis=(2, 3), keepdims=True)


if __name__ == "__main__":
    key = jax.random.PRNGKey(0)
    k1, k2 = jax.random.split(key)

    # Small conv-feature-map shape consistent with the module's expected input.
    x = jax.random.normal(k1, (2, 32, 16, 16), jnp.float32)
    out = jax.block_until_ready(mac_pallas(x))
    ref = jax.block_until_ready(mac_ref(x))
    assert out.shape == (2, 32, 1, 1)
    np.testing.assert_allclose(np.asarray(out), np.asarray(ref), atol=0, rtol=0)

    # Second case exercising channel-parallel tiling, the multi-step spatial
    # reduction (accumulator across the "arbitrary" axis) and -inf tail padding.
    x2 = jax.random.normal(k2, (2, 256, 40, 52), jnp.float32)
    out2 = jax.block_until_ready(mac_pallas(x2, spatial_tile=1024))
    ref2 = jax.block_until_ready(mac_ref(x2))
    np.testing.assert_allclose(np.asarray(out2), np.asarray(ref2), atol=0, rtol=0)

    print("KERNEL_OK")
</pallas_src>

<mosaic_0001>
module attributes {stable_mosaic.version = 11 : i64} {
  func.func @_mac_kernel(%arg0: i32, %arg1: i32, %arg2: memref<2x32x256xf32, #tpu.memory_space<vmem>>, %arg3: memref<2x32xf32, #tpu.memory_space<vmem>>) attributes {dimension_semantics = [#tpu.dimension_semantics<parallel>, #tpu.dimension_semantics<arbitrary>], iteration_bounds = array<i64: 1, 1>, scalar_prefetch = 0 : i64, scratch_operands = 0 : i64, tpu.core_type = #tpu.core_type<tc>, window_params = [{transform_indices = @transform_0, window_bounds = array<i64: 2, 32, 256>}, {transform_indices = @transform_1, window_bounds = array<i64: 2, 32>}]} {
    %c0_i32 = arith.constant 0 : i32
    %0 = arith.cmpi eq, %arg1, %c0_i32 : i32
    %1 = arith.extui %0 : i1 to i32
    %c0_i32_0 = arith.constant 0 : i32
    %2 = arith.cmpi ne, %1, %c0_i32_0 : i32
    scf.if %2 {
      %cst_7 = arith.constant 0xFF800000 : f32
      %8 = vector.broadcast %cst_7 : f32 to vector<2x32xf32>
      %c0_8 = arith.constant 0 : index
      %c0_9 = arith.constant 0 : index
      %9 = vector.load %arg3[%c0_8, %c0_9] : memref<2x32xf32, #tpu.memory_space<vmem>>, vector<2x32xf32>
      tpu.vector_store %arg3[%c0_8, %c0_9], %8 {strides = array<i32>} : memref<2x32xf32, #tpu.memory_space<vmem>>, vector<2x32xf32>,
    } else {
    }
    %c0 = arith.constant 0 : index
    %c0_1 = arith.constant 0 : index
    %3 = vector.load %arg3[%c0, %c0_1] : memref<2x32xf32, #tpu.memory_space<vmem>>, vector<2x32xf32>
    %c0_2 = arith.constant 0 : index
    %c0_3 = arith.constant 0 : index
    %c0_4 = arith.constant 0 : index
    %4 = vector.load %arg2[%c0_2, %c0_3, %c0_4] : memref<2x32x256xf32, #tpu.memory_space<vmem>>, vector<2x32x256xf32>
    %cst = arith.constant dense<0xFF800000> : vector<2x32xf32>
    %5 = vector.multi_reduction <maximumf>, %4, %cst [2] : vector<2x32x256xf32> to vector<2x32xf32>
    %6 = arith.maximumf %3, %5 : vector<2x32xf32>
    %c0_5 = arith.constant 0 : index
    %c0_6 = arith.constant 0 : index
    %7 = vector.load %arg3[%c0_5, %c0_6] : memref<2x32xf32, #tpu.memory_space<vmem>>, vector<2x32xf32>
    tpu.vector_store %arg3[%c0_5, %c0_6], %6 {strides = array<i32>} : memref<2x32xf32, #tpu.memory_space<vmem>>, vector<2x32xf32>,
    return
  }
  func.func @transform_0(%arg0: i32, %arg1: i32) -> (i32, i32, i32) {
    %c0_i32 = arith.constant 0 : i32
    %c0_i32_0 = arith.constant 0 : i32
    return %c0_i32, %arg0, %arg1 : i32, i32, i32
  }
  func.func @transform_1(%arg0: i32, %arg1: i32) -> (i32, i32) {
    %c0_i32 = arith.constant 0 : i32
    %c0_i32_0 = arith.constant 0 : i32
    return %c0_i32, %arg0 : i32, i32
  }
}

</mosaic_0001>

<llo_original>
// kernel: tpu_custom_call.1
$region0: #{tpu_custom_call.1}
  #allocation0 [shape = 'u32[]', space=smem, size = 0x4, offset = 0x4, fixed_abs, tag = 'smem constant byte address 0x4 - core index']
  #allocation1 [shape = 'u32[144,128]{1,0:T(1,128)}', space=vmem, size = 0x12000, scoped, tag = 'internal scratch']
  %s0 = inlined_call_operand.hbm [shape: f32[2,32,256], index: 0, kind: input, shape index: {}]
  %s1 = inlined_call_operand.hbm [shape: f32[2,32], index: 1, kind: output, shape index: {}]
  %s2 = sld [smem:[#allocation0]]
  $region22: #{tpu_custom_call.1} parent=0
    _
  %s4 = ssub.s32 1, %s2
  %s5 = scalar_select 0, %s4, %s2
  $region1: #{tpu_custom_call.1} parent=0
    #allocation2 [shape = 'u8[65536]{0}', space=vmem, size = 0x10000, scoped, tag = 'input window, operand 0, single buffered']
    #allocation3 [shape = 's32[1]{0}', space=sflag, size = 0x4, scoped, tag = 'scoped memory for tpu_custom_call.1']
    #allocation4 [shape = 's32[1]{0}', space=sflag, size = 0x4, scoped, tag = 'scoped memory for tpu_custom_call.1']
    #allocation5 [shape = 'u8[1024]{0}', space=vmem, size = 0x400, scoped, tag = 'output window, operand 0, single buffered']
    %6 = vsyncpa [#allocation3], 0
    %7 = vsyncpa [#allocation4], 0
    // Predicated region
    $region2: #{tpu_custom_call.1} parent=1 // pred_check
      _
    $region3: #{tpu_custom_call.1} parent=1 // pred_check_branch
      %9 = sbr.rel (0) target = $region5
    $region4: #{tpu_custom_call.1} parent=1 // pred_region
      %s11 = ssub.s32 2048, 2048
      %12 = vsyncadd [#allocation3], %s11
      %s13 = sshll.u32 [#allocation2], 4
      %s14 = int_to_ptr.vmem [resolvable:$true] %s13
      %19 = dma.hbm_to_vmem [thread:$0]  %s0, 2048, %s14, [#allocation3], 256, 256, 16
    $region5: #{tpu_custom_call.1} parent=1 // pred_fallthru
      _
    // Predicated region
    $region6: #{tpu_custom_call.1} parent=1 // pred_check
      _
    $region7: #{tpu_custom_call.1} parent=1 // pred_check_branch
      %21 = sbr.rel (0) target = $region9
    $region8: #{tpu_custom_call.1} parent=1 // pred_region
      %22 = dma.done [#allocation3], 2048
    $region9: #{tpu_custom_call.1} parent=1 // pred_fallthru
      _
    %p23 = scmp.eq.s32.totalorder 0, 0
    // Predicated region
    $region10: #{tpu_custom_call.1} parent=1 // pred_check
      %p24 = pneg %p23
    $region11: #{tpu_custom_call.1} parent=1 // pred_check_branch
      %26 = sbr.rel (%p24) target = $region13
    $region12: #{tpu_custom_call.1} parent=1 // pred_region
      %vm27 = vcmask 254976
      %28 = vst.msk [vmem:[#allocation5] sm:$0x3] %vm27, -inf
    $region13: #{tpu_custom_call.1} parent=1 // pred_fallthru
      _
    %v29 = vld [vmem:[#allocation5] sm:$0x3]
    %v30 = vld [vmem:[#allocation2] sm:$0xff]
    %v31 = vld [vmem:[#allocation2 + $0x8] sm:$0xff]
    %v32 = vld [vmem:[#allocation2 + $0x10] sm:$0xff]
    %v33 = vld [vmem:[#allocation2 + $0x18] sm:$0xff]
    %v34 = vld [vmem:[#allocation2 + $0x20] sm:$0xff]
    %v35 = vld [vmem:[#allocation2 + $0x28] sm:$0xff]
    %v36 = vld [vmem:[#allocation2 + $0x30] sm:$0xff]
    %v37 = vld [vmem:[#allocation2 + $0x38] sm:$0xff]
    %v38 = vld [vmem:[#allocation2 + $0x40] sm:$0xff]
    %v39 = vld [vmem:[#allocation2 + $0x48] sm:$0xff]
    %v40 = vld [vmem:[#allocation2 + $0x50] sm:$0xff]
    %v41 = vld [vmem:[#allocation2 + $0x58] sm:$0xff]
    %v42 = vld [vmem:[#allocation2 + $0x60] sm:$0xff]
    %v43 = vld [vmem:[#allocation2 + $0x68] sm:$0xff]
    %v44 = vld [vmem:[#allocation2 + $0x70] sm:$0xff]
    %v45 = vld [vmem:[#allocation2 + $0x78] sm:$0xff]
    %v46 = vmax.f32 %v30, %v31
    %47 = vmax.xlane.f32.xlu0 %v46
    %v48 = vpop.xlane.xlu0 %47
    %v49 = vmax.f32 %v32, %v33
    %50 = vmax.xlane.f32.xlu0 %v49
    %v51 = vpop.xlane.xlu0 %50
    %v52 = vmax.f32 %v34, %v35
    %53 = vmax.xlane.f32.xlu0 %v52
    %v54 = vpop.xlane.xlu0 %53
    %v55 = vmax.f32 %v36, %v37
    %56 = vmax.xlane.f32.xlu0 %v55
    %v57 = vpop.xlane.xlu0 %56
    %v58 = vmax.f32 %v38, %v39
    %59 = vmax.xlane.f32.xlu0 %v58
    %v60 = vpop.xlane.xlu0 %59
    %v61 = vmax.f32 %v40, %v41
    %62 = vmax.xlane.f32.xlu0 %v61
    %v63 = vpop.xlane.xlu0 %62
    %v64 = vmax.f32 %v42, %v43
    %65 = vmax.xlane.f32.xlu0 %v64
    %v66 = vpop.xlane.xlu0 %65
    %v67 = vmax.f32 %v44, %v45
    %68 = vmax.xlane.f32.xlu0 %v67
    %v69 = vpop.xlane.xlu0 %68
    %v78 = vlaneseq
    %v79 = vand.u32 %v78, 127
    %v80 = vlaneseq
    %v81 = vshrl.u32 %v80, 7
    %v82 = vsub.s32 %v79, %v81
    %v83 = vrot.slane %v48, %v82
    %v84 = vadd.s32 %v79, 4294967288
    %v85 = vlaneseq
    %v86 = vshrl.u32 %v85, 7
    %v87 = vsub.s32 %v84, %v86
    %v88 = vrot.slane %v51, %v87
    %vm89 = vcmask 130112
    %v90 = vsel %vm89, %v88, %v83
    %v91 = vadd.s32 %v79, 4294967280
    %v92 = vlaneseq
    %v93 = vshrl.u32 %v92, 7
    %v94 = vsub.s32 %v91, %v93
    %v95 = vrot.slane %v54, %v94
    %vm96 = vcmask 195712
    %v97 = vsel %vm96, %v95, %v90
    %v98 = vadd.s32 %v79, 4294967272
    %v99 = vlaneseq
    %v100 = vshrl.u32 %v99, 7
    %v101 = vsub.s32 %v98, %v100
    %v102 = vrot.slane %v57, %v101
    %vm103 = vcmask 261312
    %v104 = vsel %vm103, %v102, %v97
    %v105 = vlaneseq
    %v106 = vshrl.u32 %v105, 7
    %v107 = vsub.s32 %v79, %v106
    %v108 = vrot.slane %v60, %v107
    %v109 = vlaneseq
    %v110 = vshrl.u32 %v109, 7
    %v111 = vsub.s32 %v84, %v110
    %v112 = vrot.slane %v63, %v111
    %v113 = vsel %vm89, %v112, %v108
    %v114 = vlaneseq
    %v115 = vshrl.u32 %v114, 7
    %v116 = vsub.s32 %v91, %v115
    %v117 = vrot.slane %v66, %v116
    %v118 = vsel %vm96, %v117, %v113
    %v119 = vlaneseq
    %v120 = vshrl.u32 %v119, 7
    %v121 = vsub.s32 %v98, %v120
    %v122 = vrot.slane %v69, %v121
    %v123 = vsel %vm103, %v122, %v118
    %vm124 = vcmask 1041409
    %v125 = vsel %vm124, %v123, %v104
    %v127 = vmax.f32 %v29, %v125
    %vm128 = vcmask 254976
    %129 = vst.msk [vmem:[#allocation5] sm:$0x3] %vm128, %v127
    // Predicated region
    $region14: #{tpu_custom_call.1} parent=1 // pred_check
      _
    $region15: #{tpu_custom_call.1} parent=1 // pred_check_branch
      %131 = sbr.rel (0) target = $region17
    $region16: #{tpu_custom_call.1} parent=1 // pred_region
      %s133 = ssub.s32 32, 32
      %134 = vsyncadd [#allocation4], %s133
      %s136 = sshll.u32 [#allocation5], 4
      %s137 = int_to_ptr.vmem [resolvable:$true] %s136
      %139 = dma.vmem_to_hbm [thread:$0]  %s137, 32, %s1, [#allocation4]
    $region17: #{tpu_custom_call.1} parent=1 // pred_fallthru
      _
    // Predicated region
    $region18: #{tpu_custom_call.1} parent=1 // pred_check
      _
    $region19: #{tpu_custom_call.1} parent=1 // pred_check_branch
      %141 = sbr.rel (0) target = $region21
    $region20: #{tpu_custom_call.1} parent=1 // pred_region
      %142 = dma.done [#allocation4], 32
    $region21: #{tpu_custom_call.1} parent=1 // pred_fallthru
      _
    %143 = vsyncpa [#allocation3], 1
    %144 = vsyncpa [#allocation4], 1

</llo_original>
